<compile_context>
chip_gen: v7x
topology: tpu7x:2x2x1
jax: 0.10.0
libtpu: 0.0.40
codegen_flags: <defaults>
</compile_context>

<pallas_src>
import jax
import jax.numpy as jnp
from jax.experimental import pallas as pl
from jax.experimental.pallas import tpu as pltpu

STATE_DIM = 32
ACTION_DIM = 8
HIDDEN_ACTIONS = 128

N_FUSED = 128          # fused matmul lanes: [logits1(8) | logits2(8) | v(1) | 0...]
OUT_WIDTH = 128        # packed output slab width (lane-dense, one unmasked store)
TILE_B = 8             # batch rows per grid step (f32 sublane count)

# fused matmul column layout
C_L1 = 0
C_L2 = ACTION_DIM
C_V = 2 * ACTION_DIM

# output slab lane layout
O_P1 = 0               # [0:8)   probs head 1
O_LP1 = ACTION_DIM     # [8:16)  logp  head 1
O_P2 = 2 * ACTION_DIM  # [16:24) probs head 2
O_LP2 = 3 * ACTION_DIM # [24:32) logp  head 2
O_E1 = 32
O_E2 = 33
O_V = 34
O_IDX1 = 35
O_IDX2 = 36
O_LPSUM = 37
O_ACT1 = 38
O_ACT2 = 39
O_ENTSUM = 40
PAD_LANES = OUT_WIDTH - 41


def _acnet_kernel(obs_ref, gumbel_ref, w_ref, b_ref, out_ref):
    A = ACTION_DIM
    obs = obs_ref[...]                                            # (TILE_B, 32)

    # single fused MXU matmul (fc_action composed with both heads + fc_critic),
    # bias added as one VPU op
    lin = jnp.dot(obs, w_ref[...],
                  preferred_element_type=jnp.float32) + b_ref[...]   # (TILE_B, 128)
    logits1 = lin[:, C_L1:C_L1 + A]
    logits2 = lin[:, C_L2:C_L2 + A]
    v = lin[:, C_V:C_V + 1]

    def dist_from_logits(logits):
        # torch: sm = nn.Softmax(dim=0)(logits) on the per-env logits vector
        m = jnp.max(logits, axis=-1, keepdims=True)
        e = jnp.exp(logits - m)
        sm = e / jnp.sum(e, axis=-1, keepdims=True)               # exact divide
        # torch.distributions.Categorical(logits=sm) -> log_softmax(sm)
        m2 = jnp.max(sm, axis=-1, keepdims=True)
        lse = m2 + jnp.log(jnp.sum(jnp.exp(sm - m2), axis=-1, keepdims=True))
        logp = sm - lse
        p = jnp.exp(logp)
        ent = -jnp.sum(p * logp, axis=-1, keepdims=True)
        return p, logp, ent

    p1, lp1, e1 = dist_from_logits(logits1)
    p2, lp2, e2 = dist_from_logits(logits2)

    # ---- categorical sampling (Gumbel-max), per row ----------------------
    g = gumbel_ref[...]                                           # (TILE_B, 2A)
    lane = jax.lax.broadcasted_iota(jnp.int32, (TILE_B, A), 1).astype(jnp.float32)
    action_step = 6.0 / (A - 1)                                   # linspace(-3, 3, A)

    def sample(logp, gum):
        z = logp + gum
        m = jnp.max(z, axis=-1, keepdims=True)
        idx = jnp.min(jnp.where(z >= m, lane, jnp.float32(A)),
                      axis=-1, keepdims=True)                     # argmax as float
        lp_at = jnp.sum(jnp.where(lane == idx, logp, 0.0),
                        axis=-1, keepdims=True)                   # dist.log_prob(sample)
        act = -3.0 + idx * action_step                            # action_range[idx]
        return idx, lp_at, act

    idx1, lp1_at, act1 = sample(lp1, g[:, 0:A])
    idx2, lp2_at, act2 = sample(lp2, g[:, A:2 * A])

    # ---- single full-width store of the packed result slab ---------------
    pad = jnp.zeros((TILE_B, PAD_LANES), jnp.float32)
    out_ref[...] = jnp.concatenate(
        [p1, lp1, p2, lp2,
         e1, e2, v, idx1, idx2, lp1_at + lp2_at, act1, act2, e1 + e2, pad],
        axis=-1)


def acnet_pallas(obs, gumbel, w_fused, b_fused):
    B = obs.shape[0]
    assert B % TILE_B == 0
    grid = (B // TILE_B,)
    return pl.pallas_call(
        _acnet_kernel,
        out_shape=jax.ShapeDtypeStruct((B, OUT_WIDTH), jnp.float32),
        grid=grid,
        in_specs=[
            pl.BlockSpec((TILE_B, STATE_DIM), lambda i: (i, 0)),        # obs rows
            pl.BlockSpec((TILE_B, 2 * ACTION_DIM), lambda i: (i, 0)),   # gumbel rows
            pl.BlockSpec((STATE_DIM, N_FUSED), lambda i: (0, 0)),       # weights: resident
            pl.BlockSpec((1, N_FUSED), lambda i: (0, 0)),               # bias row: resident
        ],
        out_specs=pl.BlockSpec((TILE_B, OUT_WIDTH), lambda i: (i, 0)),
        compiler_params=pltpu.CompilerParams(
            dimension_semantics=("parallel",)),
    )(obs, gumbel, w_fused, b_fused)


def _orthogonal(key, in_dim, out_dim, scale):
    """Deterministic orthogonal init, (in, out) layout for x @ W."""
    a = jax.random.normal(key, (max(in_dim, out_dim), min(in_dim, out_dim)),
                          dtype=jnp.float32)
    q, _ = jnp.linalg.qr(a)
    if in_dim >= out_dim:
        w = q[:in_dim, :out_dim]
    else:
        w = q[:out_dim, :in_dim].T
    return (w * scale).astype(jnp.float32)


def pack_params(wa, ba, w1, b1, w2, b2, wc, bc):
    """Algebraically fuse fc_action∘action_dim_{1,2} and fc_critic into one slab.

    logits1 = obs @ (wa @ w1) + (ba @ w1 + b1)
    logits2 = obs @ (wa @ w2) + (ba @ w2 + b2)
    v       = obs @  wc       +  bc
    """
    w = jnp.zeros((STATE_DIM, N_FUSED), jnp.float32)
    w = w.at[:, C_L1:C_L1 + ACTION_DIM].set(wa @ w1)
    w = w.at[:, C_L2:C_L2 + ACTION_DIM].set(wa @ w2)
    w = w.at[:, C_V].set(wc[:, 0])

    b = jnp.zeros((1, N_FUSED), jnp.float32)
    b = b.at[0, C_L1:C_L1 + ACTION_DIM].set(ba @ w1 + b1)
    b = b.at[0, C_L2:C_L2 + ACTION_DIM].set(ba @ w2 + b2)
    b = b.at[0, C_V].set(bc[0])
    return (w, b)


def init_params(key):
    k1, k2, k3, k4 = jax.random.split(key, 4)
    wa = _orthogonal(k1, STATE_DIM, HIDDEN_ACTIONS, 0.001)      # fc_action
    w1 = _orthogonal(k2, HIDDEN_ACTIONS, ACTION_DIM, 0.001)     # action_dim_1
    w2 = _orthogonal(k3, HIDDEN_ACTIONS, ACTION_DIM, 0.001)     # action_dim_2
    wc = _orthogonal(k4, STATE_DIM, 1, 0.001)                   # fc_critic
    ba = jnp.zeros((HIDDEN_ACTIONS,), jnp.float32)
    b1 = jnp.zeros((ACTION_DIM,), jnp.float32)
    b2 = jnp.zeros((ACTION_DIM,), jnp.float32)
    bc = jnp.zeros((1,), jnp.float32)
    return pack_params(wa, ba, w1, b1, w2, b2, wc, bc)


@jax.jit
def forward(params, obs_batch, rng_key):
    """obs_batch: (B, STATE_DIM).  Each row is treated exactly like the torch
    reference's unbatched obs (DummyBody phi/actor/critic, softmax over actions)."""
    w_fused, b_fused = params
    B = obs_batch.shape[0]
    obs = obs_batch.astype(jnp.float32)
    gumbel = jax.random.gumbel(rng_key, (B, 2 * ACTION_DIM), dtype=jnp.float32)

    slab = acnet_pallas(obs, gumbel, w_fused, b_fused)           # (B, 128)

    action = jnp.stack([slab[:, O_ACT1], slab[:, O_ACT2]], axis=-1)   # (B, 2)
    return {
        'a': action,
        'log_pi_a': slab[:, O_LPSUM],                            # (B,)
        'ent': slab[:, O_ENTSUM:O_ENTSUM + 1],                   # (B, 1)
        'v': slab[:, O_V:O_V + 1],                               # (B, 1)
    }


if __name__ == "__main__":
    key = jax.random.PRNGKey(0)
    pkey, okey, skey = jax.random.split(key, 3)

    params = init_params(pkey)
    B = TILE_B  # 8 parallel env observations
    obs = jax.random.normal(okey, (B, STATE_DIM), dtype=jnp.float32)

    out = forward(params, obs, skey)
    out = jax.tree_util.tree_map(jax.block_until_ready, out)

    assert out['a'].shape == (B, 2)
    assert out['log_pi_a'].shape == (B,)
    assert out['ent'].shape == (B, 1)
    assert out['v'].shape == (B, 1)
    assert bool(jnp.all(jnp.isfinite(out['log_pi_a'])))
    assert bool(jnp.all(out['a'] >= -3.0)) and bool(jnp.all(out['a'] <= 3.0))
    print("KERNEL_OK")
</pallas_src>

<mosaic_0001>
module attributes {stable_mosaic.version = 11 : i64} {
  func.func @_acnet_kernel(%arg0: i32, %arg1: memref<8x32xf32, #tpu.memory_space<vmem>>, %arg2: memref<8x16xf32, #tpu.memory_space<vmem>>, %arg3: memref<32x128xf32, #tpu.memory_space<vmem>>, %arg4: memref<1x128xf32, #tpu.memory_space<vmem>>, %arg5: memref<8x128xf32, #tpu.memory_space<vmem>>) attributes {dimension_semantics = [#tpu.dimension_semantics<parallel>], iteration_bounds = array<i64: 1>, scalar_prefetch = 0 : i64, scratch_operands = 0 : i64, tpu.core_type = #tpu.core_type<tc>, window_params = [{transform_indices = @transform_0, window_bounds = array<i64: 8, 32>}, {transform_indices = @transform_1, window_bounds = array<i64: 8, 16>}, {pipeline_mode = #tpu.pipeline_mode<synchronous>, transform_indices = @transform_2, window_bounds = array<i64: 32, 128>}, {pipeline_mode = #tpu.pipeline_mode<synchronous>, transform_indices = @transform_3, window_bounds = array<i64: 1, 128>}, {transform_indices = @transform_4, window_bounds = array<i64: 8, 128>}]} {
    %c0 = arith.constant 0 : index
    %c0_0 = arith.constant 0 : index
    %0 = vector.load %arg1[%c0, %c0_0] : memref<8x32xf32, #tpu.memory_space<vmem>>, vector<8x32xf32>
    %c0_1 = arith.constant 0 : index
    %c0_2 = arith.constant 0 : index
    %1 = vector.load %arg3[%c0_1, %c0_2] : memref<32x128xf32, #tpu.memory_space<vmem>>, vector<32x128xf32>
    %cst = arith.constant dense<0.000000e+00> : vector<8x128xf32>
    %2 = tpu.matmul %0, %1, %cst {dimension_numbers = #tpu.dot_dimension_numbers<[1], [0], [0], [1], [0, 0, 1, 1], [], []>} : vector<8x32xf32>, vector<32x128xf32>, vector<8x128xf32> -> vector<8x128xf32>
    %c0_3 = arith.constant 0 : index
    %c0_4 = arith.constant 0 : index
    %3 = vector.load %arg4[%c0_3, %c0_4] : memref<1x128xf32, #tpu.memory_space<vmem>>, vector<1x128xf32>
    %4 = vector.broadcast %3 : vector<1x128xf32> to vector<8x128xf32>
    %5 = arith.addf %2, %4 : vector<8x128xf32>
    %6 = vector.extract_strided_slice %5 {offsets = [0, 0], sizes = [8, 8], strides = [1, 1]} : vector<8x128xf32> to vector<8x8xf32>
    %7 = vector.extract_strided_slice %5 {offsets = [0, 8], sizes = [8, 8], strides = [1, 1]} : vector<8x128xf32> to vector<8x8xf32>
    %8 = vector.extract_strided_slice %5 {offsets = [0, 16], sizes = [8, 1], strides = [1, 1]} : vector<8x128xf32> to vector<8x1xf32>
    %cst_5 = arith.constant dense<0xFF800000> : vector<8xf32>
    %9 = vector.multi_reduction <maximumf>, %6, %cst_5 [1] : vector<8x8xf32> to vector<8xf32>
    %10 = vector.shape_cast %9 : vector<8xf32> to vector<8x1xf32>
    %11 = vector.broadcast %10 : vector<8x1xf32> to vector<8x8xf32>
    %12 = arith.subf %6, %11 : vector<8x8xf32>
    %13 = math.exp %12 : vector<8x8xf32>
    %cst_6 = arith.constant dense<0.000000e+00> : vector<8xf32>
    %14 = vector.multi_reduction <add>, %13, %cst_6 [1] : vector<8x8xf32> to vector<8xf32>
    %15 = vector.shape_cast %14 : vector<8xf32> to vector<8x1xf32>
    %16 = vector.broadcast %15 : vector<8x1xf32> to vector<8x8xf32>
    %17 = arith.divf %13, %16 : vector<8x8xf32>
    %cst_7 = arith.constant dense<0xFF800000> : vector<8xf32>
    %18 = vector.multi_reduction <maximumf>, %17, %cst_7 [1] : vector<8x8xf32> to vector<8xf32>
    %19 = vector.shape_cast %18 : vector<8xf32> to vector<8x1xf32>
    %20 = vector.broadcast %19 : vector<8x1xf32> to vector<8x8xf32>
    %21 = arith.subf %17, %20 : vector<8x8xf32>
    %22 = math.exp %21 : vector<8x8xf32>
    %cst_8 = arith.constant dense<0.000000e+00> : vector<8xf32>
    %23 = vector.multi_reduction <add>, %22, %cst_8 [1] : vector<8x8xf32> to vector<8xf32>
    %24 = vector.shape_cast %23 : vector<8xf32> to vector<8x1xf32>
    %25 = math.log %24 : vector<8x1xf32>
    %26 = arith.addf %19, %25 : vector<8x1xf32>
    %27 = vector.broadcast %26 : vector<8x1xf32> to vector<8x8xf32>
    %28 = arith.subf %17, %27 : vector<8x8xf32>
    %29 = math.exp %28 : vector<8x8xf32>
    %30 = arith.mulf %29, %28 : vector<8x8xf32>
    %cst_9 = arith.constant dense<0.000000e+00> : vector<8xf32>
    %31 = vector.multi_reduction <add>, %30, %cst_9 [1] : vector<8x8xf32> to vector<8xf32>
    %32 = vector.shape_cast %31 : vector<8xf32> to vector<8x1xf32>
    %cst_10 = arith.constant 0.000000e+00 : f32
    %33 = vector.broadcast %cst_10 : f32 to vector<8x1xf32>
    %34 = arith.subf %33, %32 : vector<8x1xf32>
    %cst_11 = arith.constant dense<0xFF800000> : vector<8xf32>
    %35 = vector.multi_reduction <maximumf>, %7, %cst_11 [1] : vector<8x8xf32> to vector<8xf32>
    %36 = vector.shape_cast %35 : vector<8xf32> to vector<8x1xf32>
    %37 = vector.broadcast %36 : vector<8x1xf32> to vector<8x8xf32>
    %38 = arith.subf %7, %37 : vector<8x8xf32>
    %39 = math.exp %38 : vector<8x8xf32>
    %cst_12 = arith.constant dense<0.000000e+00> : vector<8xf32>
    %40 = vector.multi_reduction <add>, %39, %cst_12 [1] : vector<8x8xf32> to vector<8xf32>
    %41 = vector.shape_cast %40 : vector<8xf32> to vector<8x1xf32>
    %42 = vector.broadcast %41 : vector<8x1xf32> to vector<8x8xf32>
    %43 = arith.divf %39, %42 : vector<8x8xf32>
    %cst_13 = arith.constant dense<0xFF800000> : vector<8xf32>
    %44 = vector.multi_reduction <maximumf>, %43, %cst_13 [1] : vector<8x8xf32> to vector<8xf32>
    %45 = vector.shape_cast %44 : vector<8xf32> to vector<8x1xf32>
    %46 = vector.broadcast %45 : vector<8x1xf32> to vector<8x8xf32>
    %47 = arith.subf %43, %46 : vector<8x8xf32>
    %48 = math.exp %47 : vector<8x8xf32>
    %cst_14 = arith.constant dense<0.000000e+00> : vector<8xf32>
    %49 = vector.multi_reduction <add>, %48, %cst_14 [1] : vector<8x8xf32> to vector<8xf32>
    %50 = vector.shape_cast %49 : vector<8xf32> to vector<8x1xf32>
    %51 = math.log %50 : vector<8x1xf32>
    %52 = arith.addf %45, %51 : vector<8x1xf32>
    %53 = vector.broadcast %52 : vector<8x1xf32> to vector<8x8xf32>
    %54 = arith.subf %43, %53 : vector<8x8xf32>
    %55 = math.exp %54 : vector<8x8xf32>
    %56 = arith.mulf %55, %54 : vector<8x8xf32>
    %cst_15 = arith.constant dense<0.000000e+00> : vector<8xf32>
    %57 = vector.multi_reduction <add>, %56, %cst_15 [1] : vector<8x8xf32> to vector<8xf32>
    %58 = vector.shape_cast %57 : vector<8xf32> to vector<8x1xf32>
    %cst_16 = arith.constant 0.000000e+00 : f32
    %59 = vector.broadcast %cst_16 : f32 to vector<8x1xf32>
    %60 = arith.subf %59, %58 : vector<8x1xf32>
    %c0_17 = arith.constant 0 : index
    %c0_18 = arith.constant 0 : index
    %61 = vector.load %arg2[%c0_17, %c0_18] : memref<8x16xf32, #tpu.memory_space<vmem>>, vector<8x16xf32>
    %62 = tpu.iota {dimensions = array<i32: 1>} : vector<8x8xi32>
    %63 = arith.sitofp %62 : vector<8x8xi32> to vector<8x8xf32>
    %64 = vector.extract_strided_slice %61 {offsets = [0, 0], sizes = [8, 8], strides = [1, 1]} : vector<8x16xf32> to vector<8x8xf32>
    %65 = arith.addf %28, %64 : vector<8x8xf32>
    %cst_19 = arith.constant dense<0xFF800000> : vector<8xf32>
    %66 = vector.multi_reduction <maximumf>, %65, %cst_19 [1] : vector<8x8xf32> to vector<8xf32>
    %67 = vector.shape_cast %66 : vector<8xf32> to vector<8x1xf32>
    %68 = vector.broadcast %67 : vector<8x1xf32> to vector<8x8xf32>
    %69 = arith.cmpf oge, %65, %68 : vector<8x8xf32>
    %cst_20 = arith.constant 8.000000e+00 : f32
    %70 = vector.broadcast %cst_20 : f32 to vector<8x8xf32>
    %71 = arith.select %69, %63, %70 : vector<8x8xi1>, vector<8x8xf32>
    %cst_21 = arith.constant dense<0x7F800000> : vector<8xf32>
    %72 = vector.multi_reduction <minimumf>, %71, %cst_21 [1] : vector<8x8xf32> to vector<8xf32>
    %73 = vector.shape_cast %72 : vector<8xf32> to vector<8x1xf32>
    %74 = vector.broadcast %73 : vector<8x1xf32> to vector<8x8xf32>
    %75 = arith.cmpf oeq, %63, %74 : vector<8x8xf32>
    %cst_22 = arith.constant 0.000000e+00 : f32
    %76 = vector.broadcast %cst_22 : f32 to vector<8x8xf32>
    %77 = arith.select %75, %28, %76 : vector<8x8xi1>, vector<8x8xf32>
    %cst_23 = arith.constant dense<0.000000e+00> : vector<8xf32>
    %78 = vector.multi_reduction <add>, %77, %cst_23 [1] : vector<8x8xf32> to vector<8xf32>
    %79 = vector.shape_cast %78 : vector<8xf32> to vector<8x1xf32>
    %cst_24 = arith.constant 0.857142865 : f32
    %80 = vector.broadcast %cst_24 : f32 to vector<8x1xf32>
    %81 = arith.mulf %73, %80 : vector<8x1xf32>
    %cst_25 = arith.constant -3.000000e+00 : f32
    %82 = vector.broadcast %cst_25 : f32 to vector<8x1xf32>
    %83 = arith.addf %82, %81 : vector<8x1xf32>
    %84 = vector.extract_strided_slice %61 {offsets = [0, 8], sizes = [8, 8], strides = [1, 1]} : vector<8x16xf32> to vector<8x8xf32>
    %85 = arith.addf %54, %84 : vector<8x8xf32>
    %cst_26 = arith.constant dense<0xFF800000> : vector<8xf32>
    %86 = vector.multi_reduction <maximumf>, %85, %cst_26 [1] : vector<8x8xf32> to vector<8xf32>
    %87 = vector.shape_cast %86 : vector<8xf32> to vector<8x1xf32>
    %88 = vector.broadcast %87 : vector<8x1xf32> to vector<8x8xf32>
    %89 = arith.cmpf oge, %85, %88 : vector<8x8xf32>
    %cst_27 = arith.constant 8.000000e+00 : f32
    %90 = vector.broadcast %cst_27 : f32 to vector<8x8xf32>
    %91 = arith.select %89, %63, %90 : vector<8x8xi1>, vector<8x8xf32>
    %cst_28 = arith.constant dense<0x7F800000> : vector<8xf32>
    %92 = vector.multi_reduction <minimumf>, %91, %cst_28 [1] : vector<8x8xf32> to vector<8xf32>
    %93 = vector.shape_cast %92 : vector<8xf32> to vector<8x1xf32>
    %94 = vector.broadcast %93 : vector<8x1xf32> to vector<8x8xf32>
    %95 = arith.cmpf oeq, %63, %94 : vector<8x8xf32>
    %cst_29 = arith.constant 0.000000e+00 : f32
    %96 = vector.broadcast %cst_29 : f32 to vector<8x8xf32>
    %97 = arith.select %95, %54, %96 : vector<8x8xi1>, vector<8x8xf32>
    %cst_30 = arith.constant dense<0.000000e+00> : vector<8xf32>
    %98 = vector.multi_reduction <add>, %97, %cst_30 [1] : vector<8x8xf32> to vector<8xf32>
    %99 = vector.shape_cast %98 : vector<8xf32> to vector<8x1xf32>
    %cst_31 = arith.constant 0.857142865 : f32
    %100 = vector.broadcast %cst_31 : f32 to vector<8x1xf32>
    %101 = arith.mulf %93, %100 : vector<8x1xf32>
    %cst_32 = arith.constant -3.000000e+00 : f32
    %102 = vector.broadcast %cst_32 : f32 to vector<8x1xf32>
    %103 = arith.addf %102, %101 : vector<8x1xf32>
    %cst_33 = arith.constant 0.000000e+00 : f32
    %104 = vector.broadcast %cst_33 : f32 to vector<8x87xf32>
    %105 = arith.addf %79, %99 : vector<8x1xf32>
    %106 = arith.addf %34, %60 : vector<8x1xf32>
    %107 = tpu.concatenate %29, %28, %55, %54, %34, %60, %8, %73, %93, %105, %83, %103, %106, %104 in 1 : vector<8x8xf32>, vector<8x8xf32>, vector<8x8xf32>, vector<8x8xf32>, vector<8x1xf32>, vector<8x1xf32>, vector<8x1xf32>, vector<8x1xf32>, vector<8x1xf32>, vector<8x1xf32>, vector<8x1xf32>, vector<8x1xf32>, vector<8x1xf32>, vector<8x87xf32> -> vector<8x128xf32>
    %c0_34 = arith.constant 0 : index
    %c0_35 = arith.constant 0 : index
    %108 = vector.load %arg5[%c0_34, %c0_35] : memref<8x128xf32, #tpu.memory_space<vmem>>, vector<8x128xf32>
    tpu.vector_store %arg5[%c0_34, %c0_35], %107 {strides = array<i32>} : memref<8x128xf32, #tpu.memory_space<vmem>>, vector<8x128xf32>,
    return
  }
  func.func @transform_0(%arg0: i32) -> (i32, i32) {
    %c0_i32 = arith.constant 0 : i32
    %c0_i32_0 = arith.constant 0 : i32
    return %arg0, %c0_i32 : i32, i32
  }
  func.func @transform_1(%arg0: i32) -> (i32, i32) {
    %c0_i32 = arith.constant 0 : i32
    %c0_i32_0 = arith.constant 0 : i32
    return %arg0, %c0_i32 : i32, i32
  }
  func.func @transform_2(%arg0: i32) -> (i32, i32) {
    %c0_i32 = arith.constant 0 : i32
    %c0_i32_0 = arith.constant 0 : i32
    %c0_i32_1 = arith.constant 0 : i32
    return %c0_i32, %c0_i32_0 : i32, i32
  }
  func.func @transform_3(%arg0: i32) -> (i32, i32) {
    %c0_i32 = arith.constant 0 : i32
    %c0_i32_0 = arith.constant 0 : i32
    %c0_i32_1 = arith.constant 0 : i32
    return %c0_i32, %c0_i32_0 : i32, i32
  }
  func.func @transform_4(%arg0: i32) -> (i32, i32) {
    %c0_i32 = arith.constant 0 : i32
    %c0_i32_0 = arith.constant 0 : i32
    return %arg0, %c0_i32 : i32, i32
  }
}

</mosaic_0001>

<llo_original>
// kernel: forward.1
$region0: #{forward.1}
  #allocation0 [shape = 'u32[]', space=smem, size = 0x4, offset = 0x4, fixed_abs, tag = 'smem constant byte address 0x4 - core index']
  #allocation1 [shape = 'u32[144,128]{1,0:T(1,128)}', space=vmem, size = 0x12000, scoped, tag = 'internal scratch']
  %s0 = inlined_call_operand.vmem [shape: f32[8,32], index: 0, kind: input, shape index: {}]
  %s1 = inlined_call_operand.vmem [shape: f32[8,16], index: 1, kind: input, shape index: {}]
  %s2 = inlined_call_operand.vmem [shape: f32[32,128], index: 2, kind: input, shape index: {}]
  %s3 = inlined_call_operand.vmem [shape: f32[1,128], index: 3, kind: input, shape index: {}]
  %s4 = inlined_call_operand.vmem [shape: f32[8,128], index: 4, kind: output, shape index: {}]
  %s5 = sld [smem:[#allocation0]]
  $region26: #{forward.1} parent=0
    _
  %s7 = ssub.s32 1, %s5
  %s8 = scalar_select 0, %s7, %s5
  // Predicated region
  $region2: #{forward.1} parent=0 // pred_check
    _
  $region3: #{forward.1} parent=0 // pred_check_branch
    %10 = sbr.rel (0) target = $region5
  $region4: #{forward.1} parent=0 // pred_region
    _
  $region5: #{forward.1} parent=0 // pred_fallthru
    _
  // Predicated region
  $region6: #{forward.1} parent=0 // pred_check
    _
  $region7: #{forward.1} parent=0 // pred_check_branch
    %12 = sbr.rel (0) target = $region9
  $region8: #{forward.1} parent=0 // pred_region
    _
  $region9: #{forward.1} parent=0 // pred_fallthru
    _
  // Predicated region
  $region10: #{forward.1} parent=0 // pred_check
    _
  $region11: #{forward.1} parent=0 // pred_check_branch
    %14 = sbr.rel (0) target = $region13
  $region12: #{forward.1} parent=0 // pred_region
    _
  $region13: #{forward.1} parent=0 // pred_fallthru
    _
  // Predicated region
  $region14: #{forward.1} parent=0 // pred_check
    _
  $region15: #{forward.1} parent=0 // pred_check_branch
    %16 = sbr.rel (0) target = $region17
  $region16: #{forward.1} parent=0 // pred_region
    _
  $region17: #{forward.1} parent=0 // pred_fallthru
    _
  %v17 = vld [vmem:[%s0] sm:$0xff]
  %v18 = vld [vmem:[%s2] sm:$0xff]
  %v19 = vld [vmem:[%s2 + $0x8] sm:$0xff]
  %v20 = vld [vmem:[%s2 + $0x10] sm:$0xff]
  %v21 = vld [vmem:[%s2 + $0x18] sm:$0xff]
  %v22 = vld [vmem:[%s3] sm:$0x1]
  %v24 = vlaneseq
  %v25 = vshrl.u32 %v24, 7
  %v26 = vsub.s32 0, %v25
  %v27 = vrot.slane %v22, %v26
  %vm29 = vcmask 261120
  %v31 = vsel %vm29, %v17, 0
  %33 = vmatprep.subr.mxu0 0.0
  %34 = vmatpush1.msra.mxu0 %v18
  %35 = vmatprep.subr.mxu0 0.0
  %36 = vmatpush1.msra.mxu0 %v19
  %37 = vmatprep.subr.mxu0 0.0
  %38 = vmatpush1.msra.mxu0 %v20
  %39 = vmatprep.subr.mxu0 0.0
  %40 = vmatpush1.msra.mxu0 %v21
  %41 = vmatprep.subr.mxu0 0.0
  %42 = vmatpush1.msra.mxu0 0.0
  %43 = vmatprep.subr.mxu0 0.0
  %44 = vmatpush1.msra.mxu0 0.0
  %45 = vmatprep.subr.mxu0 0.0
  %46 = vmatpush1.msra.mxu0 0.0
  %47 = vmatprep.subr.mxu0 0.0
  %48 = vmatpush1.msra.mxu0 0.0
  %49 = vmatprep.subr.mxu0 0.0
  %50 = vmatpush1.msra.mxu0 0.0
  %51 = vmatprep.subr.mxu0 0.0
  %52 = vmatpush1.msra.mxu0 0.0
  %53 = vmatprep.subr.mxu0 0.0
  %54 = vmatpush1.msra.mxu0 0.0
  %55 = vmatprep.subr.mxu0 0.0
  %56 = vmatpush1.msra.mxu0 0.0
  %57 = vmatprep.subr.mxu0 0.0
  %58 = vmatpush1.msra.mxu0 0.0
  %59 = vmatprep.subr.mxu0 0.0
  %60 = vmatpush1.msra.mxu0 0.0
  %61 = vmatprep.subr.mxu0 0.0
  %62 = vmatpush1.msra.mxu0 0.0
  %63 = vmatprep.subr.mxu0 0.0
  %64 = vmatpush1.msra.mxu0 0.0
  %65 = vmatprep.subr.mxu0 0.0
  %66 = vmatpush1.msra.mxu0 0.0
  %67 = vmatprep.subr.mxu0 0.0
  %68 = vmatpush1.msra.mxu0 0.0
  %69 = vmatprep.subr.mxu0 0.0
  %70 = vmatpush1.msra.mxu0 0.0
  %71 = vmatprep.subr.mxu0 0.0
  %72 = vmatpush1.msra.mxu0 0.0
  %73 = vmatprep.subr.mxu0 0.0
  %74 = vmatpush1.msra.mxu0 0.0
  %75 = vmatprep.subr.mxu0 0.0
  %76 = vmatpush1.msra.mxu0 0.0
  %77 = vmatprep.subr.mxu0 0.0
  %78 = vmatpush1.msra.mxu0 0.0
  %79 = vmatprep.subr.mxu0 0.0
  %80 = vmatpush1.msra.mxu0 0.0
  %81 = vmatprep.subr.mxu0 0.0
  %82 = vmatpush1.msra.mxu0 0.0
  %83 = vmatprep.subr.mxu0 0.0
  %84 = vmatpush1.msra.mxu0 0.0
  %85 = vmatprep.subr.mxu0 0.0
  %86 = vmatpush1.msra.mxu0 0.0
  %87 = vmatprep.subr.mxu0 0.0
  %88 = vmatpush1.msra.mxu0 0.0
  %89 = vmatprep.subr.mxu0 0.0
  %90 = vmatpush1.msra.mxu0 0.0
  %91 = vmatprep.subr.mxu0 0.0
  %92 = vmatpush1.msra.mxu0 0.0
  %93 = vmatprep.subr.mxu0 0.0
  %94 = vmatpush1.msra.mxu0 0.0
  %95 = vmatprep.subr.mxu0 0.0
  %96 = vmatpush1.msra.mxu0 0.0
  %97 = vmatprep.mubr.f32.mxu0 0.0
  %98 = vmatmul.mubr.f32.gmra.mrb[0].mxu0 %v31
  %v99 = vpop.f32.mrb[0].mxu0
  %v100 = vadd.f32 %v27, %v99
  %v101 = vpop.f32.mrb[0].mxu0
  %102 = vdwg.mxu0
  %vm103 = vcmask 64512
  %v104 = vsel %vm103, %v100, -inf
  %105 = vmax.xlane.f32.xlu0 %v104
  %v106 = vpop.xlane.xlu0 %105
  %v107 = vsub.f32 %v100, %v106
  %v108 = vmul.f32 %v107, 1.442695
  %v109 = vpow.pop %v108
  %v110 = vsel %vm103, %v109, 0.0
  %111 = vadd.xlane.f32.xlu0 %v110
  %v112 = vpop.xlane.xlu0 %111
  %v113 = vrcp.pop %v112
  %v114 = vmul.f32 %v109, %v113
  %v115 = vsel %vm103, %v114, -inf
  %116 = vmax.xlane.f32.xlu0 %v115
  %v117 = vpop.xlane.xlu0 %116
  %v118 = vsub.f32 %v114, %v117
  %v119 = vmul.f32 %v118, 1.442695
  %v120 = vpow.pop %v119
  %v121 = vsel %vm103, %v120, 0.0
  %122 = vadd.xlane.f32.xlu0 %v121
  %v123 = vpop.xlane.xlu0 %122
  %v124 = vlog2.pop %v123
  %v125 = vmul.f32 %v124, 0.6931472
  %v126 = vadd.f32 %v117, %v125
  %v127 = vsub.f32 %v114, %v126
  %v128 = vmul.f32 %v127, 1.442695
  %v129 = vpow.pop %v128
  %v130 = vmul.f32 %v129, %v127
  %v131 = vsel %vm103, %v130, 0.0
  %132 = vadd.xlane.f32.xlu0 %v131
  %v133 = vpop.xlane.xlu0 %132
  %v134 = vsub.f32 0.0, %v133
  %vm135 = vcmask 130112
  %v136 = vsel %vm135, %v100, -inf
  %137 = vmax.xlane.f32.xlu0 %v136
  %v138 = vpop.xlane.xlu0 %137
  %v139 = vsub.f32 %v100, %v138
  %v140 = vmul.f32 %v139, 1.442695
  %v141 = vpow.pop %v140
  %143 = vrot.lane.b32.xlu0 %v141, 120
  %v144 = vpop.permute.xlu0 %143
  %v146 = vsel %vm103, %v144, 0.0
  %147 = vadd.xlane.f32.xlu0 %v146
  %v148 = vpop.xlane.xlu0 %147
  %v149 = vrcp.pop %v148
  %v150 = vmul.f32 %v141, %v149
  %v151 = vsel %vm135, %v150, -inf
  %152 = vmax.xlane.f32.xlu0 %v151
  %v153 = vpop.xlane.xlu0 %152
  %v154 = vsub.f32 %v150, %v153
  %v155 = vmul.f32 %v154, 1.442695
  %v156 = vpow.pop %v155
  %158 = vrot.lane.b32.xlu0 %v156, 120
  %v159 = vpop.permute.xlu0 %158
  %v161 = vsel %vm103, %v159, 0.0
  %162 = vadd.xlane.f32.xlu0 %v161
  %v163 = vpop.xlane.xlu0 %162
  %v164 = vlog2.pop %v163
  %v165 = vmul.f32 %v164, 0.6931472
  %v166 = vadd.f32 %v153, %v165
  %v167 = vsub.f32 %v150, %v166
  %v168 = vmul.f32 %v167, 1.442695
  %v169 = vpow.pop %v168
  %v170 = vmul.f32 %v169, %v167
  %172 = vrot.lane.b32.xlu0 %v170, 120
  %v173 = vpop.permute.xlu0 %172
  %v175 = vsel %vm103, %v173, 0.0
  %176 = vadd.xlane.f32.xlu0 %v175
  %v177 = vpop.xlane.xlu0 %176
  %v178 = vsub.f32 0.0, %v177
  %v179 = vld [vmem:[%s1] sm:$0xff]
  %v180 = vlaneseq
  %v181 = vand.u32 %v180, 127
  %v182 = vcvt.s32.f32 %v181
  %v183 = vadd.f32 %v127, %v179
  %v184 = vsel %vm103, %v183, -inf
  %185 = vmax.xlane.f32.xlu0 %v184
  %v186 = vpop.xlane.xlu0 %185
  %vm187 = vcmp.ge.f32.partialorder %v183, %v186
  %v188 = vsel %vm187, %v182, 8.0
  %v189 = vsel %vm103, %v188, inf
  %190 = vmin.xlane.f32.xlu0 %v189
  %v191 = vpop.xlane.xlu0 %190
  %vm192 = vcmp.eq.f32.partialorder %v182, %v191
  %v193 = vsel %vm192, %v127, 0.0
  %v194 = vsel %vm103, %v193, 0.0
  %195 = vadd.xlane.f32.xlu0 %v194
  %v196 = vpop.xlane.xlu0 %195
  %v197 = vmul.f32 %v191, 0.85714287
  %v198 = vadd.f32 %v197, -3.0
  %v199 = vadd.f32 %v167, %v179
  %v200 = vsel %vm135, %v199, -inf
  %201 = vmax.xlane.f32.xlu0 %v200
  %v202 = vpop.xlane.xlu0 %201
  %vm203 = vcmp.ge.f32.partialorder %v199, %v202
  %205 = vrot.lane.b32.xlu0 %v182, 8
  %v206 = vpop.permute.xlu0 %205
  %v208 = vsel %vm203, %v206, 8.0
  %v209 = vsel %vm135, %v208, inf
  %210 = vmin.xlane.f32.xlu0 %v209
  %v211 = vpop.xlane.xlu0 %210
  %vm212 = vcmp.eq.f32.partialorder %v182, %v211
  %214 = vrot.lane.b32.xlu0 %v167, 120
  %v215 = vpop.permute.xlu0 %214
  %v217 = vsel %vm212, %v215, 0.0
  %v218 = vsel %vm103, %v217, 0.0
  %219 = vadd.xlane.f32.xlu0 %v218
  %v220 = vpop.xlane.xlu0 %219
  %v221 = vmul.f32 %v211, 0.85714287
  %v222 = vadd.f32 %v221, -3.0
  %v223 = vadd.f32 %v196, %v220
  %v224 = vadd.f32 %v134, %v178
  %226 = vrot.lane.b32.xlu0 %v127, 8
  %v227 = vpop.permute.xlu0 %226
  %230 = vrot.lane.b32.xlu0 %v169, 8
  %v231 = vpop.permute.xlu0 %230
  %233 = vrot.lane.b32.xlu0 %v167, 16
  %v234 = vpop.permute.xlu0 %233
  %237 = vrot.lane.b32.xlu0 %v100, 18
  %v238 = vpop.permute.xlu0 %237
  %v240 = vsel %vm103, %v129, %v227
  %vm241 = vcmask 130048
  %v242 = vsel %vm241, %v240, %v231
  %vm243 = vcmask 195584
  %v244 = vsel %vm243, %v242, %v234
  %v245 = vsel %vm29, %v244, %v134
  %vm246 = vcmask 269312
  %v247 = vsel %vm246, %v245, %v178
  %vm248 = vcmask 277504
  %v249 = vsel %vm248, %v247, %v238
  %vm250 = vcmask 285696
  %v251 = vsel %vm250, %v249, %v191
  %vm252 = vcmask 293888
  %v253 = vsel %vm252, %v251, %v211
  %vm254 = vcmask 302080
  %v255 = vsel %vm254, %v253, %v223
  %vm256 = vcmask 310272
  %v257 = vsel %vm256, %v255, %v198
  %vm258 = vcmask 318464
  %v259 = vsel %vm258, %v257, %v222
  %vm260 = vcmask 326656
  %v261 = vsel %vm260, %v259, %v224
  %vm262 = vcmask 334848
  %v263 = vsel %vm262, %v261, 0.0
  %264 = vst [vmem:[%s4] sm:$0xff] %v263
  // Predicated region
  $region18: #{forward.1} parent=0 // pred_check
    _
  $region19: #{forward.1} parent=0 // pred_check_branch
    %266 = sbr.rel (0) target = $region21
  $region20: #{forward.1} parent=0 // pred_region
    _
  $region21: #{forward.1} parent=0 // pred_fallthru
    _
  // Predicated region
  $region22: #{forward.1} parent=0 // pred_check
    _
  $region23: #{forward.1} parent=0 // pred_check_branch
    %268 = sbr.rel (0) target = $region25
  $region24: #{forward.1} parent=0 // pred_region
    _
  $region25: #{forward.1} parent=0 // pred_fallthru
    _

</llo_original>
